<compile_context>
chip_gen: v7x
topology: tpu7x:2x2x1
jax: 0.10.0
libtpu: 0.0.40
codegen_flags: <defaults>
</compile_context>

<pallas_src>
import math

import jax
import jax.numpy as jnp
from jax.experimental import pallas as pl
from jax.experimental.pallas import tpu as pltpu

_LANES = 128


def _bce_dice_kernel(x_ref, t_ref, out_ref):
    """x_ref/t_ref: (1, TR, 128) blocks. out_ref: (1, 4, 128) per-sample partials."""
    c = pl.program_id(1)

    x = x_ref[0].astype(jnp.float32)   # (TR, 128); upcast is free for f32 inputs
    t = t_ref[0].astype(jnp.float32)

    # One transcendental per element, shared between the numerically-stable
    # BCE-with-logits term and sigmoid(x):
    #   bce   = max(x,0) - x*t + log1p(exp(-|x|))
    #   sig   = 1/(1+e)        if x >= 0
    #         = e/(1+e)        if x <  0        with e = exp(-|x|)
    e = jnp.exp(-jnp.abs(x))
    bce_elem = jnp.maximum(x, 0.0) - x * t + jnp.log1p(e)
    r = 1.0 / (1.0 + e)   # exact divide; pl.reciprocal(..., approx=True) if looser tol is OK
    p = jnp.where(x >= 0.0, r, e * r)

    # Lane-wise partials (single cross-sublane reduce per quantity per tile;
    # the cross-lane reduce happens once, in the JAX epilogue).
    bce_l = jnp.sum(bce_elem, axis=0, keepdims=True)   # (1, 128)
    int_l = jnp.sum(p * t, axis=0, keepdims=True)
    sx_l = jnp.sum(p, axis=0, keepdims=True)
    st_l = jnp.sum(t, axis=0, keepdims=True)

    partial = jnp.concatenate([bce_l, int_l, sx_l, st_l], axis=0)[None]  # (1, 4, 128)

    @pl.when(c == 0)
    def _():
        out_ref[...] = partial

    @pl.when(c > 0)
    def _():
        out_ref[...] = out_ref[...] + partial


def bce_dice_loss(x, target, *, block_rows=1024):
    """x, target: (N, C, H, W) float32/bfloat16 (NCHW). Returns scalar f32 loss."""
    n = x.shape[0]
    d = math.prod(x.shape[1:])

    # bf16 inputs are kept bf16 in HBM (halves bytes moved) and upcast in-kernel.
    if x.dtype not in (jnp.float32, jnp.bfloat16):
        x = x.astype(jnp.float32)
    if target.dtype not in (jnp.float32, jnp.bfloat16):
        target = target.astype(jnp.float32)

    # Rows-of-128-lanes layout per sample; rows padded to a multiple of the tile.
    r = pl.cdiv(d, _LANES)
    r = ((r + 7) // 8) * 8                     # sublane multiple
    tr = min(block_rows, r)                    # rows per grid step (multiple of 8)
    r_pad = ((r + tr - 1) // tr) * tr
    d_pad = r_pad * _LANES

    x2 = x.reshape(n, d)
    t2 = target.reshape(n, d)
    if d_pad != d:
        # Pad logits very negative / targets zero: padded lanes contribute
        # exactly 0 to BCE, intersection, sum_sigmoid and sum_target.
        pad = ((0, 0), (0, d_pad - d))
        x2 = jnp.pad(x2, pad, constant_values=-1e4)
        t2 = jnp.pad(t2, pad, constant_values=0.0)
    x3 = x2.reshape(n, r_pad, _LANES)
    t3 = t2.reshape(n, r_pad, _LANES)

    num_chunks = r_pad // tr

    out = pl.pallas_call(
        _bce_dice_kernel,
        out_shape=jax.ShapeDtypeStruct((n, 4, _LANES), jnp.float32),
        grid=(n, num_chunks),
        in_specs=[
            pl.BlockSpec((1, tr, _LANES), lambda s, c: (s, c, 0)),
            pl.BlockSpec((1, tr, _LANES), lambda s, c: (s, c, 0)),
        ],
        out_specs=pl.BlockSpec((1, 4, _LANES), lambda s, c: (s, 0, 0)),
        compiler_params=pltpu.CompilerParams(
            dimension_semantics=("parallel", "arbitrary"),
            vmem_limit_bytes=32 * 1024 * 1024,
        ),
    )(x3, t3)

    # Tiny epilogue: cross-lane sums + final combine (runs as plain XLA ops).
    lane_sums = jnp.sum(out, axis=-1)                      # (N, 4)
    bce = jnp.sum(lane_sums[:, 0]) / jnp.float32(n * d)
    inter = lane_sums[:, 1]
    sum_x = lane_sums[:, 2]
    sum_t = lane_sums[:, 3]
    smooth = jnp.float32(1e-05)
    dice = (inter * 2.0 + smooth) / (sum_x + sum_t + smooth)
    dice_loss = 1.0 - jnp.sum(dice) / jnp.float32(n)
    return 0.5 * bce + dice_loss


def _reference(x, target):
    """Pure-JAX reference of the crop=False forward path (for verification)."""
    x = x.astype(jnp.float32)
    t = target.astype(jnp.float32)
    bce = jnp.mean(jnp.maximum(x, 0.0) - x * t + jnp.log1p(jnp.exp(-jnp.abs(x))))
    smooth = 1e-05
    p = jax.nn.sigmoid(x)
    n = x.shape[0]
    p = p.reshape(n, -1)
    t = t.reshape(n, -1)
    inter = jnp.sum(p * t, axis=1)
    dice = (inter * 2.0 + smooth) / (jnp.sum(p, axis=1) + jnp.sum(t, axis=1) + smooth)
    dice = 1.0 - jnp.sum(dice) / n
    return 0.5 * bce + dice


if __name__ == "__main__":
    key = jax.random.PRNGKey(0)
    kx, kt = jax.random.split(key)

    # Small NCHW shapes: batch=2, channels=4, spatial=16x16 (D = 1024, no pad).
    x = jax.random.normal(kx, (2, 4, 16, 16), dtype=jnp.float32)
    target = jax.random.uniform(kt, (2, 4, 16, 16), dtype=jnp.float32)

    loss = jax.block_until_ready(bce_dice_loss(x, target))
    ref = jax.block_until_ready(_reference(x, target))
    if not jnp.allclose(loss, ref, rtol=2e-5, atol=2e-5):
        raise AssertionError(f"mismatch: pallas={loss} ref={ref}")

    # Ragged shape exercising the padding path (D = 3*17*19 = 969).
    kx2, kt2 = jax.random.split(kt)
    x_odd = jax.random.normal(kx2, (2, 3, 17, 19), dtype=jnp.float32)
    t_odd = jax.random.uniform(kt2, (2, 3, 17, 19), dtype=jnp.float32)
    loss_odd = jax.block_until_ready(bce_dice_loss(x_odd, t_odd))
    ref_odd = jax.block_until_ready(_reference(x_odd, t_odd))
    if not jnp.allclose(loss_odd, ref_odd, rtol=2e-5, atol=2e-5):
        raise AssertionError(f"mismatch (ragged): pallas={loss_odd} ref={ref_odd}")

    print("KERNEL_OK")
</pallas_src>

<mosaic_0001>
module attributes {stable_mosaic.version = 11 : i64} {
  func.func @_bce_dice_kernel(%arg0: i32, %arg1: i32, %arg2: memref<1x8x128xf32, #tpu.memory_space<vmem>>, %arg3: memref<1x8x128xf32, #tpu.memory_space<vmem>>, %arg4: memref<1x4x128xf32, #tpu.memory_space<vmem>>) attributes {dimension_semantics = [#tpu.dimension_semantics<parallel>, #tpu.dimension_semantics<arbitrary>], iteration_bounds = array<i64: 2, 1>, scalar_prefetch = 0 : i64, scratch_operands = 0 : i64, tpu.core_type = #tpu.core_type<tc>, window_params = [{transform_indices = @transform_0, window_bounds = array<i64: 1, 8, 128>}, {transform_indices = @transform_1, window_bounds = array<i64: 1, 8, 128>}, {transform_indices = @transform_2, window_bounds = array<i64: 1, 4, 128>}]} {
    %c0 = arith.constant 0 : index
    %c0_0 = arith.constant 0 : index
    %c0_1 = arith.constant 0 : index
    %0 = vector.load %arg2[%c0, %c0_0, %c0_1] : memref<1x8x128xf32, #tpu.memory_space<vmem>>, vector<1x8x128xf32>
    %1 = vector.shape_cast %0 : vector<1x8x128xf32> to vector<8x128xf32>
    %c0_2 = arith.constant 0 : index
    %c0_3 = arith.constant 0 : index
    %c0_4 = arith.constant 0 : index
    %2 = vector.load %arg3[%c0_2, %c0_3, %c0_4] : memref<1x8x128xf32, #tpu.memory_space<vmem>>, vector<1x8x128xf32>
    %3 = vector.shape_cast %2 : vector<1x8x128xf32> to vector<8x128xf32>
    %4 = math.absf %1 : vector<8x128xf32>
    %cst = arith.constant 0.000000e+00 : f32
    %5 = vector.broadcast %cst : f32 to vector<8x128xf32>
    %6 = arith.subf %5, %4 : vector<8x128xf32>
    %7 = math.exp %6 : vector<8x128xf32>
    %cst_5 = arith.constant 0.000000e+00 : f32
    %8 = vector.broadcast %cst_5 : f32 to vector<8x128xf32>
    %9 = arith.maximumf %1, %8 : vector<8x128xf32>
    %10 = arith.mulf %1, %3 : vector<8x128xf32>
    %11 = arith.subf %9, %10 : vector<8x128xf32>
    %12 = math.log1p %7 : vector<8x128xf32>
    %13 = arith.addf %11, %12 : vector<8x128xf32>
    %cst_6 = arith.constant 1.000000e+00 : f32
    %14 = vector.broadcast %cst_6 : f32 to vector<8x128xf32>
    %15 = arith.addf %14, %7 : vector<8x128xf32>
    %cst_7 = arith.constant 1.000000e+00 : f32
    %16 = vector.broadcast %cst_7 : f32 to vector<8x128xf32>
    %17 = arith.divf %16, %15 : vector<8x128xf32>
    %cst_8 = arith.constant 0.000000e+00 : f32
    %18 = vector.broadcast %cst_8 : f32 to vector<8x128xf32>
    %19 = arith.cmpf oge, %1, %18 : vector<8x128xf32>
    %20 = arith.mulf %7, %17 : vector<8x128xf32>
    %21 = arith.select %19, %17, %20 : vector<8x128xi1>, vector<8x128xf32>
    %cst_9 = arith.constant dense<0.000000e+00> : vector<128xf32>
    %22 = vector.multi_reduction <add>, %13, %cst_9 [0] : vector<8x128xf32> to vector<128xf32>
    %23 = vector.shape_cast %22 : vector<128xf32> to vector<1x128xf32>
    %24 = arith.mulf %21, %3 : vector<8x128xf32>
    %cst_10 = arith.constant dense<0.000000e+00> : vector<128xf32>
    %25 = vector.multi_reduction <add>, %24, %cst_10 [0] : vector<8x128xf32> to vector<128xf32>
    %26 = vector.shape_cast %25 : vector<128xf32> to vector<1x128xf32>
    %cst_11 = arith.constant dense<0.000000e+00> : vector<128xf32>
    %27 = vector.multi_reduction <add>, %21, %cst_11 [0] : vector<8x128xf32> to vector<128xf32>
    %28 = vector.shape_cast %27 : vector<128xf32> to vector<1x128xf32>
    %cst_12 = arith.constant dense<0.000000e+00> : vector<128xf32>
    %29 = vector.multi_reduction <add>, %3, %cst_12 [0] : vector<8x128xf32> to vector<128xf32>
    %30 = vector.shape_cast %29 : vector<128xf32> to vector<1x128xf32>
    %31 = tpu.concatenate %23, %26, %28, %30 in 0 : vector<1x128xf32>, vector<1x128xf32>, vector<1x128xf32>, vector<1x128xf32> -> vector<4x128xf32>
    %32 = vector.shape_cast %31 : vector<4x128xf32> to vector<1x4x128xf32>
    %c0_i32 = arith.constant 0 : i32
    %33 = arith.cmpi eq, %arg1, %c0_i32 : i32
    %34 = arith.extui %33 : i1 to i32
    %c0_i32_13 = arith.constant 0 : i32
    %35 = arith.cmpi ne, %34, %c0_i32_13 : i32
    scf.if %35 {
      %c0_16 = arith.constant 0 : index
      %c0_17 = arith.constant 0 : index
      %c0_18 = arith.constant 0 : index
      %39 = vector.load %arg4[%c0_16, %c0_17, %c0_18] : memref<1x4x128xf32, #tpu.memory_space<vmem>>, vector<1x4x128xf32>
      tpu.vector_store %arg4[%c0_16, %c0_17, %c0_18], %32 {strides = array<i32>} : memref<1x4x128xf32, #tpu.memory_space<vmem>>, vector<1x4x128xf32>,
    } else {
    }
    %c0_i32_14 = arith.constant 0 : i32
    %36 = arith.cmpi sgt, %arg1, %c0_i32_14 : i32
    %37 = arith.extui %36 : i1 to i32
    %c0_i32_15 = arith.constant 0 : i32
    %38 = arith.cmpi ne, %37, %c0_i32_15 : i32
    scf.if %38 {
      %c0_16 = arith.constant 0 : index
      %c0_17 = arith.constant 0 : index
      %c0_18 = arith.constant 0 : index
      %39 = vector.load %arg4[%c0_16, %c0_17, %c0_18] : memref<1x4x128xf32, #tpu.memory_space<vmem>>, vector<1x4x128xf32>
      %40 = arith.addf %39, %32 : vector<1x4x128xf32>
      %c0_19 = arith.constant 0 : index
      %c0_20 = arith.constant 0 : index
      %c0_21 = arith.constant 0 : index
      %41 = vector.load %arg4[%c0_19, %c0_20, %c0_21] : memref<1x4x128xf32, #tpu.memory_space<vmem>>, vector<1x4x128xf32>
      tpu.vector_store %arg4[%c0_19, %c0_20, %c0_21], %40 {strides = array<i32>} : memref<1x4x128xf32, #tpu.memory_space<vmem>>, vector<1x4x128xf32>,
    } else {
    }
    return
  }
  func.func @transform_0(%arg0: i32, %arg1: i32) -> (i32, i32, i32) {
    %c0_i32 = arith.constant 0 : i32
    %c0_i32_0 = arith.constant 0 : i32
    return %arg0, %arg1, %c0_i32 : i32, i32, i32
  }
  func.func @transform_1(%arg0: i32, %arg1: i32) -> (i32, i32, i32) {
    %c0_i32 = arith.constant 0 : i32
    %c0_i32_0 = arith.constant 0 : i32
    return %arg0, %arg1, %c0_i32 : i32, i32, i32
  }
  func.func @transform_2(%arg0: i32, %arg1: i32) -> (i32, i32, i32) {
    %c0_i32 = arith.constant 0 : i32
    %c0_i32_0 = arith.constant 0 : i32
    %c0_i32_1 = arith.constant 0 : i32
    return %arg0, %c0_i32, %c0_i32_0 : i32, i32, i32
  }
}

</mosaic_0001>

<llo_original>
// kernel: tpu_custom_call.1
$region0: #{tpu_custom_call.1}
  #allocation0 [shape = 'u32[]', space=smem, size = 0x4, offset = 0x4, fixed_abs, tag = 'smem constant byte address 0x4 - core index']
  #allocation1 [shape = 'u32[144,128]{1,0:T(1,128)}', space=vmem, size = 0x12000, scoped, tag = 'internal scratch']
  %s0 = inlined_call_operand.hbm [shape: f32[2,8,128], index: 0, kind: input, shape index: {}]
  %s1 = inlined_call_operand.hbm [shape: f32[2,8,128], index: 1, kind: input, shape index: {}]
  %s2 = inlined_call_operand.hbm [shape: f32[2,4,128], index: 2, kind: output, shape index: {}]
  %s3 = sld [smem:[#allocation0]]
  $region57: #{tpu_custom_call.1} parent=0
    _
  %s5 = ssub.s32 1, %s3
  %s6 = scalar_select 0, %s5, %s3
  $region1: #{tpu_custom_call.1} parent=0
    #allocation2 [shape = 'u8[8192]{0}', space=vmem, size = 0x2000, scoped, tag = 'input window, operand 0']
    #allocation3 [shape = 's32[2]{0}', space=sflag, size = 0x8, scoped, tag = 'scoped memory for tpu_custom_call.1']
    #allocation4 [shape = 's32[2]{0}', space=sflag, size = 0x8, scoped, tag = 'scoped memory for tpu_custom_call.1']
    #allocation5 [shape = 'u8[8192]{0}', space=vmem, size = 0x2000, scoped, tag = 'input window, operand 1']
    #allocation6 [shape = 's32[2]{0}', space=sflag, size = 0x8, scoped, tag = 'scoped memory for tpu_custom_call.1']
    #allocation7 [shape = 'u8[4096]{0}', space=vmem, size = 0x1000, scoped, tag = 'output window, operand 0']
    %7 = vsyncpa [#allocation3], 0
    %s8 = scalar_lea.sflag [#allocation3], 1
    %9 = vsyncpa %s8, 0
    %10 = vsyncpa [#allocation6], 0
    %s11 = scalar_lea.sflag [#allocation6], 1
    %12 = vsyncpa %s11, 0
    %13 = vsyncpa [#allocation4], 0
    %s14 = scalar_lea.sflag [#allocation4], 1
    %15 = vsyncpa %s14, 0
    loop: start=0, step=1, limit=4
    $region2: #{tpu_custom_call.1} parent=1 // loop_pre_header
      _
    $region3: #{tpu_custom_call.1} parent=1 // loop_header
      %s17 = sphi 0, %s21
      %p18 = scmp.ge.s32.totalorder %s17, 4
      %s24 = sphi 0, %s36
      %s25 = sphi 0, %s32
      %s26 = sphi 0, %s24
      %s27 = sphi 0, %s25
      %s28 = sphi 0, %s26
      %s29 = sphi 0, %s27
      %s41 = sphi 0, %s43
      %s44 = sphi 0, %s41
      %s45 = sphi 0, %s44
      %s61 = sphi 0, %s45
      %s69 = sphi 0, %s71
      %s72 = sphi 0, %s69
      %s73 = sphi 0, %s72
      %s89 = sphi 0, %s73
      %s95 = sphi 0, %s97
      %s98 = sphi 0, %s95
      %s99 = sphi 0, %s98
      %s115 = sphi 0, %s99
    $region4: #{tpu_custom_call.1} parent=1 // loop_header_branch
      %20 = sbr.rel (%p18) target = $region8
    $region5: #{tpu_custom_call.1} parent=1 // loop_body
      %s22 = ssub.s32 %s17, 1
      %s23 = ssub.s32 %s17, 2
      %s30 = sadd.s32 1, %s25
      %p31 = scmp.ge.s32.totalorder %s30, 1
      %s32 = scalar_select %p31, 0, %s30
      %s33 = sadd.s32 1, %s24
      %s34 = scalar_select %p31, %s33, %s24
      %p35 = scmp.ge.s32.totalorder %s34, 2
      %s36 = scalar_select %p35, 0, %s34
      %s37 = ssub.s32 %s24, %s36
      %s38 = ssub.s32 %s25, %s32
      %s39 = sor.u32 %s37, %s38
      %p40 = scmp.eq.s32.totalorder %s39, 0
      %s42 = sadd.s32 %s41, 1
      %s43 = scalar_select %p40, %s41, %s42
      %p46 = pneg %p40
      %p47 = scmp.eq.s32.totalorder %s17, 1
      %p48 = por %p46, %p47
      %p49 = scmp.ne.s32.totalorder %s41, %s44
      %p50 = scmp.eq.s32.totalorder %s17, 0
      %p51 = por %p49, %p50
      %p52 = scmp.ne.s32.totalorder %s41, %s44
      %p53 = scmp.eq.s32.totalorder %s22, 1
      %p54 = por %p52, %p53
      %p55 = scmp.ne.s32.totalorder %s44, %s45
      %p56 = scmp.eq.s32.totalorder %s22, 0
      %p57 = por %p55, %p56
      %p58 = scmp.ne.s32.totalorder %s44, %s45
      %p59 = scmp.eq.s32.totalorder %s23, 1
      %p60 = por %p58, %p59
      %p62 = scmp.ne.s32.totalorder %s45, %s61
      %p63 = scmp.eq.s32.totalorder %s23, 0
      %p64 = por %p62, %p63
      %s65 = ssub.s32 %s24, %s36
      %s66 = ssub.s32 %s25, %s32
      %s67 = sor.u32 %s65, %s66
      %p68 = scmp.eq.s32.totalorder %s67, 0
      %s70 = sadd.s32 %s69, 1
      %s71 = scalar_select %p68, %s69, %s70
      %p74 = pneg %p68
      %p75 = scmp.eq.s32.totalorder %s17, 1
      %p76 = por %p74, %p75
      %p77 = scmp.ne.s32.totalorder %s69, %s72
      %p78 = scmp.eq.s32.totalorder %s17, 0
      %p79 = por %p77, %p78
      %p80 = scmp.ne.s32.totalorder %s69, %s72
      %p81 = scmp.eq.s32.totalorder %s22, 1
      %p82 = por %p80, %p81
      %p83 = scmp.ne.s32.totalorder %s72, %s73
      %p84 = scmp.eq.s32.totalorder %s22, 0
      %p85 = por %p83, %p84
      %p86 = scmp.ne.s32.totalorder %s72, %s73
      %p87 = scmp.eq.s32.totalorder %s23, 1
      %p88 = por %p86, %p87
      %p90 = scmp.ne.s32.totalorder %s73, %s89
      %p91 = scmp.eq.s32.totalorder %s23, 0
      %p92 = por %p90, %p91
      %s93 = ssub.s32 %s24, %s36
      %p94 = scmp.eq.s32.totalorder %s93, 0
      %s96 = sadd.s32 %s95, 1
      %s97 = scalar_select %p94, %s95, %s96
      %p100 = pneg %p94
      %p101 = scmp.eq.s32.totalorder %s17, 1
      %p102 = por %p100, %p101
      %p103 = scmp.ne.s32.totalorder %s95, %s98
      %p104 = scmp.eq.s32.totalorder %s17, 0
      %p105 = por %p103, %p104
      %p106 = scmp.ne.s32.totalorder %s95, %s98
      %p107 = scmp.eq.s32.totalorder %s22, 1
      %p108 = por %p106, %p107
      %p109 = scmp.ne.s32.totalorder %s98, %s99
      %p110 = scmp.eq.s32.totalorder %s22, 0
      %p111 = por %p109, %p110
      %p112 = scmp.ne.s32.totalorder %s98, %s99
      %p113 = scmp.eq.s32.totalorder %s23, 1
      %p114 = por %p112, %p113
      %p116 = scmp.ne.s32.totalorder %s99, %s115
      %p117 = scmp.eq.s32.totalorder %s23, 0
      %p118 = por %p116, %p117
      %p119 = scmp.le.s32.totalorder 1, %s17
      %p120 = scmp.lt.s32.totalorder %s17, 3
      %p121 = pnand %p119, %p120
      %p122 = pneg %p121
      // Predicated region
      $region9: #{tpu_custom_call.1} parent=5 // pred_check
        _
      $region10: #{tpu_custom_call.1} parent=5 // pred_check_branch
        %124 = sbr.rel (%p121) target = $region12
      $region11: #{tpu_custom_call.1} parent=5 // pred_region
        %s125 = ssub.s32 %s17, 1
      $region12: #{tpu_custom_call.1} parent=5 // pred_fallthru
        _
      %p126 = scmp.lt.s32.totalorder %s17, 2
      // Predicated region
      $region13: #{tpu_custom_call.1} parent=5 // pred_check
        %p127 = pneg %p126
      $region14: #{tpu_custom_call.1} parent=5 // pred_check_branch
        %129 = sbr.rel (%p127) target = $region16
      $region15: #{tpu_custom_call.1} parent=5 // pred_region
        // Predicated region
        $region17: #{tpu_custom_call.1} parent=15 // pred_check
          %p130 = pneg %p51
        $region18: #{tpu_custom_call.1} parent=15 // pred_check_branch
          %132 = sbr.rel (%p130) target = $region20
        $region19: #{tpu_custom_call.1} parent=15 // pred_region
          %s133 = sand.u32 %s41, 1
          %s134 = scalar_lea.sflag [#allocation3], %s133
          %s135 = sand.u32 %s41, 1
          %s136 = smul.addr %s135, 8
          %s137 = scalar_lea.vmem [#allocation2], %s136
          %s139 = ssub.s32 128, 128
          %140 = vsyncadd %s134, %s139
          %s141 = sadd.s32 %s25, %s24
          %s142 = smul.addr %s141, 128
          %s143 = scalar_lea.hbm %s0, %s142
          %s145 = sshll.u32 %s137, 4
          %s146 = int_to_ptr.vmem [resolvable:$true] %s145
          %148 = dma.hbm_to_vmem [thread:$0]  %s143, 128, %s146, %s134
        $region20: #{tpu_custom_call.1} parent=15 // pred_fallthru
          _
        // Predicated region
        $region21: #{tpu_custom_call.1} parent=15 // pred_check
          %p149 = pneg %p79
        $region22: #{tpu_custom_call.1} parent=15 // pred_check_branch
          %151 = sbr.rel (%p149) target = $region24
        $region23: #{tpu_custom_call.1} parent=15 // pred_region
          %s152 = sand.u32 %s69, 1
          %s153 = scalar_lea.sflag [#allocation6], %s152
          %s154 = sand.u32 %s69, 1
          %s155 = smul.addr %s154, 8
          %s156 = scalar_lea.vmem [#allocation5], %s155
          %s158 = ssub.s32 128, 128
          %159 = vsyncadd %s153, %s158
          %s160 = sadd.s32 %s25, %s24
          %s161 = smul.addr %s160, 128
          %s162 = scalar_lea.hbm %s1, %s161
          %s164 = sshll.u32 %s156, 4
          %s165 = int_to_ptr.vmem [resolvable:$true] %s164
          %167 = dma.hbm_to_vmem [thread:$0]  %s162, 128, %s165, %s153
        $region24: #{tpu_custom_call.1} parent=15 // pred_fallthru
          _
      $region16: #{tpu_custom_call.1} parent=5 // pred_fallthru
        _
      %p168 = scmp.le.s32.totalorder 1, %s17
      %p169 = scmp.lt.s32.totalorder %s17, 3
      %p170 = pnand %p168, %p169
      %p171 = pneg %p170
      // Predicated region
      $region25: #{tpu_custom_call.1} parent=5 // pred_check
        _
      $region26: #{tpu_custom_call.1} parent=5 // pred_check_branch
        %173 = sbr.rel (%p170) target = $region28
      $region27: #{tpu_custom_call.1} parent=5 // pred_region
        %s174 = ssub.s32 %s17, 1
        %s175 = sand.u32 %s44, 1
        %s176 = scalar_lea.sflag [#allocation3], %s175
        %s177 = sand.u32 %s44, 1
        %s178 = smul.addr %s177, 8
        %s179 = scalar_lea.vmem [#allocation2], %s178
        // Predicated region
        $region29: #{tpu_custom_call.1} parent=27 // pred_check
          %p180 = pneg %p57
        $region30: #{tpu_custom_call.1} parent=27 // pred_check_branch
          %182 = sbr.rel (%p180) target = $region32
        $region31: #{tpu_custom_call.1} parent=27 // pred_region
          %183 = dma.done %s176, 128
        $region32: #{tpu_custom_call.1} parent=27 // pred_fallthru
          _
        %s184 = sand.u32 %s72, 1
        %s185 = scalar_lea.sflag [#allocation6], %s184
        %s186 = sand.u32 %s72, 1
        %s187 = smul.addr %s186, 8
        %s188 = scalar_lea.vmem [#allocation5], %s187
        // Predicated region
        $region33: #{tpu_custom_call.1} parent=27 // pred_check
          %p189 = pneg %p85
        $region34: #{tpu_custom_call.1} parent=27 // pred_check_branch
          %191 = sbr.rel (%p189) target = $region36
        $region35: #{tpu_custom_call.1} parent=27 // pred_region
          %192 = dma.done %s185, 128
        $region36: #{tpu_custom_call.1} parent=27 // pred_fallthru
          _
        %s193 = sand.u32 %s44, 1
        %s194 = scalar_lea.sflag [#allocation3], %s193
        %s195 = sand.u32 %s44, 1
        %s196 = smul.addr %s195, 8
        %s197 = scalar_lea.vmem [#allocation2], %s196
        %p198 = pneg %p57
        %p199 = pneg %p54
        %s200 = sand.u32 %s72, 1
        %s201 = scalar_lea.sflag [#allocation6], %s200
        %s202 = sand.u32 %s72, 1
        %s203 = smul.addr %s202, 8
        %s204 = scalar_lea.vmem [#allocation5], %s203
        %p205 = pneg %p85
        %p206 = pneg %p82
        %p207 = pneg %p111
        %p208 = pneg %p108
        %s209 = sand.u32 %s98, 1
        %s210 = scalar_lea.sflag [#allocation4], %s209
        %s211 = sand.u32 %s98, 1
        %s212 = smul.addr %s211, 4
        %s213 = scalar_lea.vmem [#allocation7], %s212
        %v214 = vld [vmem:[%s179] sm:$0xff]
        %v215 = vld [vmem:[%s188] sm:$0xff]
        %v216 = vand.u32 2147483647, %v214
        %v217 = vsub.f32 0.0, %v216
        %v218 = vmul.f32 %v217, 1.442695
        %v219 = vpow.pop %v218
        %v220 = vmax.f32 %v214, 0.0
        %v221 = vmul.f32 %v214, %v215
        %v222 = vsub.f32 %v220, %v221
        %v223 = vadd.f32 %v219, 1.0
        %v224 = vlog2.pop %v223
        %v225 = vmul.f32 %v224, 0.6931472
        %v226 = vmul.f32 -0.5, %v219
        %v227 = vadd.f32 %v226, 1.0
        %v228 = vmul.f32 %v227, %v219
        %v229 = vand.u32 2147483647, %v219
        %vm230 = vcmp.lt.f32.partialorder %v229, 0.0004427343
        %v231 = vsel %vm230, %v228, %v225
        %v232 = vadd.f32 %v222, %v231
        %v233 = vadd.f32 %v219, 1.0
        %v234 = vrcp.pop %v233
        %v235 = vmul.f32 1.0, %v234
        %vm236 = vcmp.ge.f32.partialorder %v214, 0.0
        %v237 = vmul.f32 %v219, %v235
        %v238 = vsel %vm236, %v235, %v237
        %v239 = vrot.slane %v232, 4
        %v240 = vadd.f32 %v232, %v239
        %v241 = vrot.slane %v240, 2
        %v242 = vadd.f32 %v240, %v241
        %v243 = vrot.slane %v242, 1
        %v244 = vadd.f32 %v242, %v243
        %v245 = vmul.f32 %v238, %v215
        %v246 = vrot.slane %v245, 4
        %v247 = vadd.f32 %v245, %v246
        %v248 = vrot.slane %v247, 2
        %v249 = vadd.f32 %v247, %v248
        %v250 = vrot.slane %v249, 1
        %v251 = vadd.f32 %v249, %v250
        %v252 = vrot.slane %v238, 4
        %v253 = vadd.f32 %v238, %v252
        %v254 = vrot.slane %v253, 2
        %v255 = vadd.f32 %v253, %v254
        %v256 = vrot.slane %v255, 1
        %v257 = vadd.f32 %v255, %v256
        %v258 = vrot.slane %v215, 4
        %v259 = vadd.f32 %v215, %v258
        %v260 = vrot.slane %v259, 2
        %v261 = vadd.f32 %v259, %v260
        %v262 = vrot.slane %v261, 1
        %v263 = vadd.f32 %v261, %v262
        %vm264 = vcmask 1040384
        %v265 = vsel %vm264, %v244, %v251
        %vm266 = vcmask 1041408
        %v267 = vsel %vm266, %v265, %v257
        %vm268 = vcmask 1042432
        %v269 = vsel %vm268, %v267, %v263
        %p270 = scmp.eq.s32.totalorder %s27, 0
        // Predicated region
        $region37: #{tpu_custom_call.1} parent=27 // pred_check
          %p271 = pneg %p270
        $region38: #{tpu_custom_call.1} parent=27 // pred_check_branch
          %273 = sbr.rel (%p271) target = $region40
        $region39: #{tpu_custom_call.1} parent=27 // pred_region
          %274 = vst [vmem:[%s213] sm:$0xf] %v269
        $region40: #{tpu_custom_call.1} parent=27 // pred_fallthru
          _
        %p275 = scmp.gt.s32.totalorder %s27, 0
        // Predicated region
        $region41: #{tpu_custom_call.1} parent=27 // pred_check
          %p276 = pneg %p275
        $region42: #{tpu_custom_call.1} parent=27 // pred_check_branch
          %278 = sbr.rel (%p276) target = $region44
        $region43: #{tpu_custom_call.1} parent=27 // pred_region
          %v279 = vld [vmem:[%s213] sm:$0xf]
          %v280 = vadd.f32 %v279, %v269
          %281 = vst [vmem:[%s213] sm:$0xf] %v280
        $region44: #{tpu_custom_call.1} parent=27 // pred_fallthru
          _
        %s282 = sand.u32 %s98, 1
        %s283 = scalar_lea.sflag [#allocation4], %s282
        %s284 = sand.u32 %s98, 1
        %s285 = smul.addr %s284, 4
        %s286 = scalar_lea.vmem [#allocation7], %s285
        // Predicated region
        $region45: #{tpu_custom_call.1} parent=27 // pred_check
          %p287 = pneg %p108
        $region46: #{tpu_custom_call.1} parent=27 // pred_check_branch
          %289 = sbr.rel (%p287) target = $region48
        $region47: #{tpu_custom_call.1} parent=27 // pred_region
          %s291 = ssub.s32 64, 64
          %292 = vsyncadd %s283, %s291
          %s293 = smul.addr %s26, 64
          %s294 = scalar_lea.hbm %s2, %s293
          %s296 = sshll.u32 %s286, 4
          %s297 = int_to_ptr.vmem [resolvable:$true] %s296
          %299 = dma.vmem_to_hbm [thread:$0]  %s297, 64, %s294, %s283
        $region48: #{tpu_custom_call.1} parent=27 // pred_fallthru
          _
      $region28: #{tpu_custom_call.1} parent=5 // pred_fallthru
        _
      %p300 = scmp.le.s32.totalorder 2, %s17
      // Predicated region
      $region49: #{tpu_custom_call.1} parent=5 // pred_check
        %p301 = pneg %p300
      $region50: #{tpu_custom_call.1} parent=5 // pred_check_branch
        %303 = sbr.rel (%p301) target = $region52
      $region51: #{tpu_custom_call.1} parent=5 // pred_region
        %s304 = ssub.s32 %s17, 2
        // Predicated region
        $region53: #{tpu_custom_call.1} parent=51 // pred_check
          %p305 = pneg %p114
        $region54: #{tpu_custom_call.1} parent=51 // pred_check_branch
          %307 = sbr.rel (%p305) target = $region56
        $region55: #{tpu_custom_call.1} parent=51 // pred_region
          %s308 = sand.u32 %s99, 1
          %s309 = scalar_lea.sflag [#allocation4], %s308
          %s310 = sand.u32 %s99, 1
          %s311 = smul.addr %s310, 4
          %s312 = scalar_lea.vmem [#allocation7], %s311
          %313 = dma.done %s309, 64
        $region56: #{tpu_custom_call.1} parent=51 // pred_fallthru
          _
      $region52: #{tpu_custom_call.1} parent=5 // pred_fallthru
        _
    $region6: #{tpu_custom_call.1} parent=1 // loop_footer
      %s21 = sadd.s32 1, %s17
    $region7: #{tpu_custom_call.1} parent=1 // loop_footer_branch
      %16 = sbr.rel target = $region3
    $region8: #{tpu_custom_call.1} parent=1 // loop_exit
      _
    %314 = vsyncpa [#allocation3], 1
    %s315 = scalar_lea.sflag [#allocation3], 1
    %316 = vsyncpa %s315, 1
    %317 = vsyncpa [#allocation6], 1
    %s318 = scalar_lea.sflag [#allocation6], 1
    %319 = vsyncpa %s318, 1
    %320 = vsyncpa [#allocation4], 1
    %s321 = scalar_lea.sflag [#allocation4], 1
    %322 = vsyncpa %s321, 1

</llo_original>
